<compile_context>
chip_gen: v7x
topology: tpu7x:2x2x1
jax: 0.10.0
libtpu: 0.0.40
codegen_flags: <defaults>
</compile_context>

<pallas_src>
import functools

import jax
import jax.numpy as jnp
from jax import lax
from jax.experimental import pallas as pl
from jax.experimental.pallas import tpu as pltpu


def _leaky_relu(x, slope=0.01):
    return jnp.where(x > 0, x, slope * x)


def _round_up(n, m):
    return -(-n // m) * m


def conv_dynamics_kernel(masks_ref, x_ref, w1_ref, b1_ref, w2_ref, b2_ref,
                         w3_ref, b3_ref, o_ref, *, shifts, batch_tile):
    """One grid step = `batch_tile` batch elements.

    masks_ref: (9, HW)        f32 boundary masks, one row per 3x3 tap
    x_ref:     (bt, Cp, HW)   input, channels padded to a multiple of 8
    w1_ref:    (Fp, 9*Cp)     conv1 weights in (Cout, taps*Cin) layout
    b1_ref:    (Fp, 1)
    w2_ref:    (Fp, 9*Fp)
    b2_ref:    (Fp, 1)
    w3_ref:    (9*Fp, 1)      conv3 weights as a column (used on the VPU)
    b3_ref:    (1, 1)
    o_ref:     (bt, 1, HW)    lane-dense output
    """
    # Grid-invariant loads, hoisted out of the per-sample loop.
    masks = [masks_ref[t:t + 1, :] for t in range(9)]
    w1 = w1_ref[...]
    b1 = b1_ref[...]
    w2 = w2_ref[...]
    b2 = b2_ref[...]
    w3 = w3_ref[...]
    b3 = b3_ref[...]

    def patches(act):
        # act: (C, HW) -> im2col matrix (9*C, HW). Tap t is the activation
        # shifted by the t-th 3x3 offset along the flattened spatial axis,
        # with out-of-image positions zeroed by the precomputed mask.
        cols = []
        for t, s in enumerate(shifts):
            if s == 0:          # center tap: no shift, mask is all-ones
                cols.append(act)
            else:
                cols.append(pltpu.roll(act, s, axis=1) * masks[t])
        return jnp.concatenate(cols, axis=0)

    for b in range(batch_tile):
        x = x_ref[b]                                              # (Cp, HW)
        h1 = _leaky_relu(
            jnp.dot(w1, patches(x), preferred_element_type=jnp.float32) + b1)
        h2 = _leaky_relu(
            jnp.dot(w2, patches(h1), preferred_element_type=jnp.float32) + b2)
        # conv3: Cout == 1 -> VPU multiply + sublane reduce (lane-dense result)
        p3 = patches(h2)                                          # (9*Fp, HW)
        out = jnp.sum(p3 * w3, axis=0, keepdims=True) + b3        # (1, HW)
        o_ref[b] = out


def conv_dynamics_fast(x_nchw, params, *, batch_tile=1):
    """Pallas forward pass. x_nchw: (N, n_history*2, H, W) float32.

    Returns (N, 1, H, W) float32 (same as the PyTorch module's `out`).
    """
    w1, b1, w2, b2, w3, b3 = params
    N, c_in, H, W = x_nchw.shape
    n_filt = w1.shape[-1]
    HW = H * W
    bt = batch_tile
    assert N % bt == 0, "batch_tile must divide the batch size"

    cp = _round_up(c_in, 8)      # padded input channels
    fp = _round_up(n_filt, 8)    # padded hidden channels

    # ---- input: NCHW -> (N, Cp, H*W); contiguous reshape, channel pad only ----
    x = x_nchw.astype(jnp.float32).reshape(N, c_in, HW)
    if cp != c_in:
        x = jnp.pad(x, ((0, 0), (0, cp - c_in), (0, 0)))

    # ---- weights: HWIO (3,3,Ci,Co) -> (Co_p, 9*Ci_p); biases -> (Co_p, 1) ----
    def pack_w(w, ci_p, co_p):
        kh, kw, ci, co = w.shape
        wp = jnp.pad(w.astype(jnp.float32),
                     ((0, 0), (0, 0), (0, ci_p - ci), (0, co_p - co)))
        return jnp.transpose(wp, (3, 0, 1, 2)).reshape(co_p, 9 * ci_p)

    def pack_b(b, co_p):
        return jnp.pad(b.astype(jnp.float32),
                       ((0, 0), (0, co_p - b.shape[-1]))).reshape(co_p, 1)

    w1r = pack_w(w1, cp, fp)                      # (Fp, 9*Cp)
    w2r = pack_w(w2, fp, fp)                      # (Fp, 9*Fp)
    w3c = jnp.pad(w3.astype(jnp.float32),
                  ((0, 0), (0, 0), (0, fp - n_filt), (0, 0))).reshape(9 * fp, 1)
    b1c = pack_b(b1, fp)
    b2c = pack_b(b2, fp)
    b3c = b3.astype(jnp.float32).reshape(1, 1)

    # ---- per-tap lane shifts + boundary masks over the flattened H*W axis ----
    idx = jnp.arange(HW, dtype=jnp.int32)
    hh, ww = idx // W, idx % W
    shifts = []
    mask_rows = []
    for dy in (-1, 0, 1):
        for dx in (-1, 0, 1):
            shifts.append((-(dy * W + dx)) % HW)
            valid = ((hh + dy >= 0) & (hh + dy < H) &
                     (ww + dx >= 0) & (ww + dx < W))
            mask_rows.append(valid.astype(jnp.float32))
    masks = jnp.stack(mask_rows, axis=0)          # (9, HW)

    kern = functools.partial(conv_dynamics_kernel,
                             shifts=tuple(shifts), batch_tile=bt)

    out = pl.pallas_call(
        kern,
        out_shape=jax.ShapeDtypeStruct((N, 1, HW), jnp.float32),
        grid_spec=pltpu.PrefetchScalarGridSpec(
            num_scalar_prefetch=0,
            grid=(N // bt,),
            in_specs=[
                pl.BlockSpec((9, HW), lambda n: (0, 0)),
                pl.BlockSpec((bt, cp, HW), lambda n: (n, 0, 0)),
                pl.BlockSpec(w1r.shape, lambda n: (0, 0)),
                pl.BlockSpec(b1c.shape, lambda n: (0, 0)),
                pl.BlockSpec(w2r.shape, lambda n: (0, 0)),
                pl.BlockSpec(b2c.shape, lambda n: (0, 0)),
                pl.BlockSpec(w3c.shape, lambda n: (0, 0)),
                pl.BlockSpec(b3c.shape, lambda n: (0, 0)),
            ],
            out_specs=pl.BlockSpec((bt, 1, HW), lambda n: (n, 0, 0)),
        ),
        compiler_params=pltpu.CompilerParams(
            dimension_semantics=("parallel",)),
    )(masks, x, w1r, b1c, w2r, b2c, w3c, b3c)

    # (N, 1, H*W) -> NCHW (N, 1, H, W); contiguous reshape, no copy.
    return out.reshape(N, 1, H, W)


def _ref_forward(x_nchw, params):
    """Pure-JAX reference (equivalent to the PyTorch nn.Sequential)."""
    w1, b1, w2, b2, w3, b3 = params
    x = jnp.transpose(x_nchw, (0, 2, 3, 1)).astype(jnp.float32)  # NHWC
    dn = ('NHWC', 'HWIO', 'NHWC')
    h = lax.conv_general_dilated(x, w1, (1, 1), 'SAME',
                                 dimension_numbers=dn) + b1[0]
    h = _leaky_relu(h)
    h = lax.conv_general_dilated(h, w2, (1, 1), 'SAME',
                                 dimension_numbers=dn) + b2[0]
    h = _leaky_relu(h)
    h = lax.conv_general_dilated(h, w3, (1, 1), 'SAME',
                                 dimension_numbers=dn) + b3[0]
    return jnp.transpose(h, (0, 3, 1, 2))


if __name__ == "__main__":
    # Small shapes consistent with the module: n_history=2 -> 4 input channels,
    # n_filt=8 filters per layer, batch=2, 16x16 spatial grid.
    N, n_history, H, W = 2, 2, 16, 16
    c_in = n_history * 2
    n_filt = 8

    key = jax.random.PRNGKey(0)
    k = jax.random.split(key, 8)

    # Deterministic synthetic parameters (HWIO weights, (1, Cout) biases).
    w1 = 0.1 * jax.random.normal(k[0], (3, 3, c_in, n_filt), jnp.float32)
    b1 = 0.1 * jax.random.normal(k[1], (1, n_filt), jnp.float32)
    w2 = 0.1 * jax.random.normal(k[2], (3, 3, n_filt, n_filt), jnp.float32)
    b2 = 0.1 * jax.random.normal(k[3], (1, n_filt), jnp.float32)
    w3 = 0.1 * jax.random.normal(k[4], (3, 3, n_filt, 1), jnp.float32)
    b3 = 0.1 * jax.random.normal(k[5], (1, 1), jnp.float32)
    params = (w1, b1, w2, b2, w3, b3)

    # Input in PyTorch NCHW layout.
    x = jax.random.normal(k[6], (N, c_in, H, W), jnp.float32)

    # batch_tile=1 keeps the grid extent at N (=2) so both v7x TensorCores get
    # a block; larger batches can raise batch_tile to amortize grid overhead.
    fwd = jax.jit(functools.partial(conv_dynamics_fast, batch_tile=1))
    out = jax.block_until_ready(fwd(x, params))

    ref = jax.block_until_ready(_ref_forward(x, params))
    assert out.shape == (N, 1, H, W), out.shape
    err = float(jnp.max(jnp.abs(out - ref)))
    assert jnp.allclose(out, ref, atol=2e-4, rtol=2e-4), err

    print("KERNEL_OK")
</pallas_src>

<mosaic_0001>
module attributes {stable_mosaic.version = 11 : i64} {
  func.func @conv_dynamics_kernel(%arg0: i32, %arg1: memref<9x256xf32, #tpu.memory_space<vmem>>, %arg2: memref<1x8x256xf32, #tpu.memory_space<vmem>>, %arg3: memref<8x72xf32, #tpu.memory_space<vmem>>, %arg4: memref<8x1xf32, #tpu.memory_space<vmem>>, %arg5: memref<8x72xf32, #tpu.memory_space<vmem>>, %arg6: memref<8x1xf32, #tpu.memory_space<vmem>>, %arg7: memref<72x1xf32, #tpu.memory_space<vmem>>, %arg8: memref<1x1xf32, #tpu.memory_space<vmem>>, %arg9: memref<1x1x256xf32, #tpu.memory_space<vmem>>) attributes {dimension_semantics = [#tpu.dimension_semantics<parallel>], iteration_bounds = array<i64: 2>, scalar_prefetch = 0 : i64, scratch_operands = 0 : i64, tpu.core_type = #tpu.core_type<tc>, window_params = [{pipeline_mode = #tpu.pipeline_mode<synchronous>, transform_indices = @transform_0, window_bounds = array<i64: 9, 256>}, {transform_indices = @transform_1, window_bounds = array<i64: 1, 8, 256>}, {pipeline_mode = #tpu.pipeline_mode<synchronous>, transform_indices = @transform_2, window_bounds = array<i64: 8, 72>}, {pipeline_mode = #tpu.pipeline_mode<synchronous>, transform_indices = @transform_3, window_bounds = array<i64: 8, 1>}, {pipeline_mode = #tpu.pipeline_mode<synchronous>, transform_indices = @transform_4, window_bounds = array<i64: 8, 72>}, {pipeline_mode = #tpu.pipeline_mode<synchronous>, transform_indices = @transform_5, window_bounds = array<i64: 8, 1>}, {pipeline_mode = #tpu.pipeline_mode<synchronous>, transform_indices = @transform_6, window_bounds = array<i64: 72, 1>}, {pipeline_mode = #tpu.pipeline_mode<synchronous>, transform_indices = @transform_7, window_bounds = array<i64: 1, 1>}, {transform_indices = @transform_8, window_bounds = array<i64: 1, 1, 256>}]} {
    %c0 = arith.constant 0 : index
    %c0_0 = arith.constant 0 : index
    %0 = vector.load %arg1[%c0, %c0_0] : memref<9x256xf32, #tpu.memory_space<vmem>>, vector<1x256xf32>
    %c1 = arith.constant 1 : index
    %c0_1 = arith.constant 0 : index
    %1 = vector.load %arg1[%c1, %c0_1] : memref<9x256xf32, #tpu.memory_space<vmem>>, vector<1x256xf32>
    %c2 = arith.constant 2 : index
    %c0_2 = arith.constant 0 : index
    %2 = vector.load %arg1[%c2, %c0_2] : memref<9x256xf32, #tpu.memory_space<vmem>>, vector<1x256xf32>
    %c3 = arith.constant 3 : index
    %c0_3 = arith.constant 0 : index
    %3 = vector.load %arg1[%c3, %c0_3] : memref<9x256xf32, #tpu.memory_space<vmem>>, vector<1x256xf32>
    %c5 = arith.constant 5 : index
    %c0_4 = arith.constant 0 : index
    %4 = vector.load %arg1[%c5, %c0_4] : memref<9x256xf32, #tpu.memory_space<vmem>>, vector<1x256xf32>
    %c6 = arith.constant 6 : index
    %c0_5 = arith.constant 0 : index
    %5 = vector.load %arg1[%c6, %c0_5] : memref<9x256xf32, #tpu.memory_space<vmem>>, vector<1x256xf32>
    %c7 = arith.constant 7 : index
    %c0_6 = arith.constant 0 : index
    %6 = vector.load %arg1[%c7, %c0_6] : memref<9x256xf32, #tpu.memory_space<vmem>>, vector<1x256xf32>
    %c8 = arith.constant 8 : index
    %c0_7 = arith.constant 0 : index
    %7 = vector.load %arg1[%c8, %c0_7] : memref<9x256xf32, #tpu.memory_space<vmem>>, vector<1x256xf32>
    %c0_8 = arith.constant 0 : index
    %c0_9 = arith.constant 0 : index
    %8 = vector.load %arg3[%c0_8, %c0_9] : memref<8x72xf32, #tpu.memory_space<vmem>>, vector<8x72xf32>
    %c0_10 = arith.constant 0 : index
    %c0_11 = arith.constant 0 : index
    %9 = vector.load %arg4[%c0_10, %c0_11] : memref<8x1xf32, #tpu.memory_space<vmem>>, vector<8x1xf32>
    %c0_12 = arith.constant 0 : index
    %c0_13 = arith.constant 0 : index
    %10 = vector.load %arg5[%c0_12, %c0_13] : memref<8x72xf32, #tpu.memory_space<vmem>>, vector<8x72xf32>
    %c0_14 = arith.constant 0 : index
    %c0_15 = arith.constant 0 : index
    %11 = vector.load %arg6[%c0_14, %c0_15] : memref<8x1xf32, #tpu.memory_space<vmem>>, vector<8x1xf32>
    %c0_16 = arith.constant 0 : index
    %c0_17 = arith.constant 0 : index
    %12 = vector.load %arg7[%c0_16, %c0_17] : memref<72x1xf32, #tpu.memory_space<vmem>>, vector<72x1xf32>
    %c0_18 = arith.constant 0 : index
    %c0_19 = arith.constant 0 : index
    %13 = vector.load %arg8[%c0_18, %c0_19] : memref<1x1xf32, #tpu.memory_space<vmem>>, vector<1x1xf32>
    %c0_20 = arith.constant 0 : index
    %c0_21 = arith.constant 0 : index
    %c0_22 = arith.constant 0 : index
    %14 = vector.load %arg2[%c0_20, %c0_21, %c0_22] : memref<1x8x256xf32, #tpu.memory_space<vmem>>, vector<1x8x256xf32>
    %15 = vector.shape_cast %14 : vector<1x8x256xf32> to vector<8x256xf32>
    %c17_i32 = arith.constant 17 : i32
    %16 = tpu.dynamic_rotate %15 by %c17_i32 dim 1 : vector<8x256xf32>, i32 -> vector<8x256xf32>
    %17 = vector.broadcast %0 : vector<1x256xf32> to vector<8x256xf32>
    %18 = arith.mulf %16, %17 : vector<8x256xf32>
    %c16_i32 = arith.constant 16 : i32
    %19 = tpu.dynamic_rotate %15 by %c16_i32 dim 1 : vector<8x256xf32>, i32 -> vector<8x256xf32>
    %20 = vector.broadcast %1 : vector<1x256xf32> to vector<8x256xf32>
    %21 = arith.mulf %19, %20 : vector<8x256xf32>
    %c15_i32 = arith.constant 15 : i32
    %22 = tpu.dynamic_rotate %15 by %c15_i32 dim 1 : vector<8x256xf32>, i32 -> vector<8x256xf32>
    %23 = vector.broadcast %2 : vector<1x256xf32> to vector<8x256xf32>
    %24 = arith.mulf %22, %23 : vector<8x256xf32>
    %c1_i32 = arith.constant 1 : i32
    %25 = tpu.dynamic_rotate %15 by %c1_i32 dim 1 : vector<8x256xf32>, i32 -> vector<8x256xf32>
    %26 = vector.broadcast %3 : vector<1x256xf32> to vector<8x256xf32>
    %27 = arith.mulf %25, %26 : vector<8x256xf32>
    %c255_i32 = arith.constant 255 : i32
    %28 = tpu.dynamic_rotate %15 by %c255_i32 dim 1 : vector<8x256xf32>, i32 -> vector<8x256xf32>
    %29 = vector.broadcast %4 : vector<1x256xf32> to vector<8x256xf32>
    %30 = arith.mulf %28, %29 : vector<8x256xf32>
    %c241_i32 = arith.constant 241 : i32
    %31 = tpu.dynamic_rotate %15 by %c241_i32 dim 1 : vector<8x256xf32>, i32 -> vector<8x256xf32>
    %32 = vector.broadcast %5 : vector<1x256xf32> to vector<8x256xf32>
    %33 = arith.mulf %31, %32 : vector<8x256xf32>
    %c240_i32 = arith.constant 240 : i32
    %34 = tpu.dynamic_rotate %15 by %c240_i32 dim 1 : vector<8x256xf32>, i32 -> vector<8x256xf32>
    %35 = vector.broadcast %6 : vector<1x256xf32> to vector<8x256xf32>
    %36 = arith.mulf %34, %35 : vector<8x256xf32>
    %c239_i32 = arith.constant 239 : i32
    %37 = tpu.dynamic_rotate %15 by %c239_i32 dim 1 : vector<8x256xf32>, i32 -> vector<8x256xf32>
    %38 = vector.broadcast %7 : vector<1x256xf32> to vector<8x256xf32>
    %39 = arith.mulf %37, %38 : vector<8x256xf32>
    %40 = tpu.concatenate %18, %21, %24, %27, %15, %30, %33, %36, %39 in 0 : vector<8x256xf32>, vector<8x256xf32>, vector<8x256xf32>, vector<8x256xf32>, vector<8x256xf32>, vector<8x256xf32>, vector<8x256xf32>, vector<8x256xf32>, vector<8x256xf32> -> vector<72x256xf32>
    %cst = arith.constant dense<0.000000e+00> : vector<8x256xf32>
    %41 = tpu.matmul %8, %40, %cst {dimension_numbers = #tpu.dot_dimension_numbers<[1], [0], [0], [1], [0, 0, 1, 1], [], []>} : vector<8x72xf32>, vector<72x256xf32>, vector<8x256xf32> -> vector<8x256xf32>
    %42 = vector.broadcast %9 : vector<8x1xf32> to vector<8x256xf32>
    %43 = arith.addf %41, %42 : vector<8x256xf32>
    %cst_23 = arith.constant 0.000000e+00 : f32
    %44 = vector.broadcast %cst_23 : f32 to vector<8x256xf32>
    %45 = arith.cmpf ogt, %43, %44 : vector<8x256xf32>
    %cst_24 = arith.constant 0.00999999977 : f32
    %46 = vector.broadcast %cst_24 : f32 to vector<8x256xf32>
    %47 = arith.mulf %46, %43 : vector<8x256xf32>
    %48 = arith.select %45, %43, %47 : vector<8x256xi1>, vector<8x256xf32>
    %c17_i32_25 = arith.constant 17 : i32
    %49 = tpu.dynamic_rotate %48 by %c17_i32_25 dim 1 : vector<8x256xf32>, i32 -> vector<8x256xf32>
    %50 = vector.broadcast %0 : vector<1x256xf32> to vector<8x256xf32>
    %51 = arith.mulf %49, %50 : vector<8x256xf32>
    %c16_i32_26 = arith.constant 16 : i32
    %52 = tpu.dynamic_rotate %48 by %c16_i32_26 dim 1 : vector<8x256xf32>, i32 -> vector<8x256xf32>
    %53 = vector.broadcast %1 : vector<1x256xf32> to vector<8x256xf32>
    %54 = arith.mulf %52, %53 : vector<8x256xf32>
    %c15_i32_27 = arith.constant 15 : i32
    %55 = tpu.dynamic_rotate %48 by %c15_i32_27 dim 1 : vector<8x256xf32>, i32 -> vector<8x256xf32>
    %56 = vector.broadcast %2 : vector<1x256xf32> to vector<8x256xf32>
    %57 = arith.mulf %55, %56 : vector<8x256xf32>
    %c1_i32_28 = arith.constant 1 : i32
    %58 = tpu.dynamic_rotate %48 by %c1_i32_28 dim 1 : vector<8x256xf32>, i32 -> vector<8x256xf32>
    %59 = vector.broadcast %3 : vector<1x256xf32> to vector<8x256xf32>
    %60 = arith.mulf %58, %59 : vector<8x256xf32>
    %c255_i32_29 = arith.constant 255 : i32
    %61 = tpu.dynamic_rotate %48 by %c255_i32_29 dim 1 : vector<8x256xf32>, i32 -> vector<8x256xf32>
    %62 = vector.broadcast %4 : vector<1x256xf32> to vector<8x256xf32>
    %63 = arith.mulf %61, %62 : vector<8x256xf32>
    %c241_i32_30 = arith.constant 241 : i32
    %64 = tpu.dynamic_rotate %48 by %c241_i32_30 dim 1 : vector<8x256xf32>, i32 -> vector<8x256xf32>
    %65 = vector.broadcast %5 : vector<1x256xf32> to vector<8x256xf32>
    %66 = arith.mulf %64, %65 : vector<8x256xf32>
    %c240_i32_31 = arith.constant 240 : i32
    %67 = tpu.dynamic_rotate %48 by %c240_i32_31 dim 1 : vector<8x256xf32>, i32 -> vector<8x256xf32>
    %68 = vector.broadcast %6 : vector<1x256xf32> to vector<8x256xf32>
    %69 = arith.mulf %67, %68 : vector<8x256xf32>
    %c239_i32_32 = arith.constant 239 : i32
    %70 = tpu.dynamic_rotate %48 by %c239_i32_32 dim 1 : vector<8x256xf32>, i32 -> vector<8x256xf32>
    %71 = vector.broadcast %7 : vector<1x256xf32> to vector<8x256xf32>
    %72 = arith.mulf %70, %71 : vector<8x256xf32>
    %73 = tpu.concatenate %51, %54, %57, %60, %48, %63, %66, %69, %72 in 0 : vector<8x256xf32>, vector<8x256xf32>, vector<8x256xf32>, vector<8x256xf32>, vector<8x256xf32>, vector<8x256xf32>, vector<8x256xf32>, vector<8x256xf32>, vector<8x256xf32> -> vector<72x256xf32>
    %cst_33 = arith.constant dense<0.000000e+00> : vector<8x256xf32>
    %74 = tpu.matmul %10, %73, %cst_33 {dimension_numbers = #tpu.dot_dimension_numbers<[1], [0], [0], [1], [0, 0, 1, 1], [], []>} : vector<8x72xf32>, vector<72x256xf32>, vector<8x256xf32> -> vector<8x256xf32>
    %75 = vector.broadcast %11 : vector<8x1xf32> to vector<8x256xf32>
    %76 = arith.addf %74, %75 : vector<8x256xf32>
    %cst_34 = arith.constant 0.000000e+00 : f32
    %77 = vector.broadcast %cst_34 : f32 to vector<8x256xf32>
    %78 = arith.cmpf ogt, %76, %77 : vector<8x256xf32>
    %cst_35 = arith.constant 0.00999999977 : f32
    %79 = vector.broadcast %cst_35 : f32 to vector<8x256xf32>
    %80 = arith.mulf %79, %76 : vector<8x256xf32>
    %81 = arith.select %78, %76, %80 : vector<8x256xi1>, vector<8x256xf32>
    %c17_i32_36 = arith.constant 17 : i32
    %82 = tpu.dynamic_rotate %81 by %c17_i32_36 dim 1 : vector<8x256xf32>, i32 -> vector<8x256xf32>
    %83 = vector.broadcast %0 : vector<1x256xf32> to vector<8x256xf32>
    %84 = arith.mulf %82, %83 : vector<8x256xf32>
    %c16_i32_37 = arith.constant 16 : i32
    %85 = tpu.dynamic_rotate %81 by %c16_i32_37 dim 1 : vector<8x256xf32>, i32 -> vector<8x256xf32>
    %86 = vector.broadcast %1 : vector<1x256xf32> to vector<8x256xf32>
    %87 = arith.mulf %85, %86 : vector<8x256xf32>
    %c15_i32_38 = arith.constant 15 : i32
    %88 = tpu.dynamic_rotate %81 by %c15_i32_38 dim 1 : vector<8x256xf32>, i32 -> vector<8x256xf32>
    %89 = vector.broadcast %2 : vector<1x256xf32> to vector<8x256xf32>
    %90 = arith.mulf %88, %89 : vector<8x256xf32>
    %c1_i32_39 = arith.constant 1 : i32
    %91 = tpu.dynamic_rotate %81 by %c1_i32_39 dim 1 : vector<8x256xf32>, i32 -> vector<8x256xf32>
    %92 = vector.broadcast %3 : vector<1x256xf32> to vector<8x256xf32>
    %93 = arith.mulf %91, %92 : vector<8x256xf32>
    %c255_i32_40 = arith.constant 255 : i32
    %94 = tpu.dynamic_rotate %81 by %c255_i32_40 dim 1 : vector<8x256xf32>, i32 -> vector<8x256xf32>
    %95 = vector.broadcast %4 : vector<1x256xf32> to vector<8x256xf32>
    %96 = arith.mulf %94, %95 : vector<8x256xf32>
    %c241_i32_41 = arith.constant 241 : i32
    %97 = tpu.dynamic_rotate %81 by %c241_i32_41 dim 1 : vector<8x256xf32>, i32 -> vector<8x256xf32>
    %98 = vector.broadcast %5 : vector<1x256xf32> to vector<8x256xf32>
    %99 = arith.mulf %97, %98 : vector<8x256xf32>
    %c240_i32_42 = arith.constant 240 : i32
    %100 = tpu.dynamic_rotate %81 by %c240_i32_42 dim 1 : vector<8x256xf32>, i32 -> vector<8x256xf32>
    %101 = vector.broadcast %6 : vector<1x256xf32> to vector<8x256xf32>
    %102 = arith.mulf %100, %101 : vector<8x256xf32>
    %c239_i32_43 = arith.constant 239 : i32
    %103 = tpu.dynamic_rotate %81 by %c239_i32_43 dim 1 : vector<8x256xf32>, i32 -> vector<8x256xf32>
    %104 = vector.broadcast %7 : vector<1x256xf32> to vector<8x256xf32>
    %105 = arith.mulf %103, %104 : vector<8x256xf32>
    %106 = tpu.concatenate %84, %87, %90, %93, %81, %96, %99, %102, %105 in 0 : vector<8x256xf32>, vector<8x256xf32>, vector<8x256xf32>, vector<8x256xf32>, vector<8x256xf32>, vector<8x256xf32>, vector<8x256xf32>, vector<8x256xf32>, vector<8x256xf32> -> vector<72x256xf32>
    %107 = vector.broadcast %12 : vector<72x1xf32> to vector<72x256xf32>
    %108 = arith.mulf %106, %107 : vector<72x256xf32>
    %cst_44 = arith.constant dense<0.000000e+00> : vector<256xf32>
    %109 = vector.multi_reduction <add>, %108, %cst_44 [0] : vector<72x256xf32> to vector<256xf32>
    %110 = vector.shape_cast %109 : vector<256xf32> to vector<1x256xf32>
    %111 = vector.broadcast %13 : vector<1x1xf32> to vector<1x256xf32>
    %112 = arith.addf %110, %111 : vector<1x256xf32>
    %c0_45 = arith.constant 0 : index
    %c0_46 = arith.constant 0 : index
    %c0_47 = arith.constant 0 : index
    %113 = vector.load %arg9[%c0_45, %c0_46, %c0_47] : memref<1x1x256xf32, #tpu.memory_space<vmem>>, vector<1x1x256xf32>
    %114 = vector.shape_cast %113 : vector<1x1x256xf32> to vector<1x256xf32>
    %115 = vector.shape_cast %112 : vector<1x256xf32> to vector<1x1x256xf32>
    tpu.vector_store %arg9[%c0_45, %c0_46, %c0_47], %115 {strides = array<i32>} : memref<1x1x256xf32, #tpu.memory_space<vmem>>, vector<1x1x256xf32>,
    return
  }
  func.func @transform_0(%arg0: i32) -> (i32, i32) {
    %c0_i32 = arith.constant 0 : i32
    %c0_i32_0 = arith.constant 0 : i32
    %c0_i32_1 = arith.constant 0 : i32
    return %c0_i32, %c0_i32_0 : i32, i32
  }
  func.func @transform_1(%arg0: i32) -> (i32, i32, i32) {
    %c0_i32 = arith.constant 0 : i32
    %c0_i32_0 = arith.constant 0 : i32
    %c0_i32_1 = arith.constant 0 : i32
    return %arg0, %c0_i32, %c0_i32_0 : i32, i32, i32
  }
  func.func @transform_2(%arg0: i32) -> (i32, i32) {
    %c0_i32 = arith.constant 0 : i32
    %c0_i32_0 = arith.constant 0 : i32
    %c0_i32_1 = arith.constant 0 : i32
    return %c0_i32, %c0_i32_0 : i32, i32
  }
  func.func @transform_3(%arg0: i32) -> (i32, i32) {
    %c0_i32 = arith.constant 0 : i32
    %c0_i32_0 = arith.constant 0 : i32
    %c0_i32_1 = arith.constant 0 : i32
    return %c0_i32, %c0_i32_0 : i32, i32
  }
  func.func @transform_4(%arg0: i32) -> (i32, i32) {
    %c0_i32 = arith.constant 0 : i32
    %c0_i32_0 = arith.constant 0 : i32
    %c0_i32_1 = arith.constant 0 : i32
    return %c0_i32, %c0_i32_0 : i32, i32
  }
  func.func @transform_5(%arg0: i32) -> (i32, i32) {
    %c0_i32 = arith.constant 0 : i32
    %c0_i32_0 = arith.constant 0 : i32
    %c0_i32_1 = arith.constant 0 : i32
    return %c0_i32, %c0_i32_0 : i32, i32
  }
  func.func @transform_6(%arg0: i32) -> (i32, i32) {
    %c0_i32 = arith.constant 0 : i32
    %c0_i32_0 = arith.constant 0 : i32
    %c0_i32_1 = arith.constant 0 : i32
    return %c0_i32, %c0_i32_0 : i32, i32
  }
  func.func @transform_7(%arg0: i32) -> (i32, i32) {
    %c0_i32 = arith.constant 0 : i32
    %c0_i32_0 = arith.constant 0 : i32
    %c0_i32_1 = arith.constant 0 : i32
    return %c0_i32, %c0_i32_0 : i32, i32
  }
  func.func @transform_8(%arg0: i32) -> (i32, i32, i32) {
    %c0_i32 = arith.constant 0 : i32
    %c0_i32_0 = arith.constant 0 : i32
    %c0_i32_1 = arith.constant 0 : i32
    return %arg0, %c0_i32, %c0_i32_0 : i32, i32, i32
  }
}

</mosaic_0001>

<llo_original>
// kernel: conv_dynamics_fast.1
$region0: #{conv_dynamics_fast.1}
  #allocation0 [shape = 'u32[]', space=smem, size = 0x4, offset = 0x4, fixed_abs, tag = 'smem constant byte address 0x4 - core index']
  #allocation1 [shape = 'u32[144,128]{1,0:T(1,128)}', space=vmem, size = 0x12000, scoped, tag = 'internal scratch']
  #allocation2 [shape = 'f32[1,1]{1,0:T(1,128)S(1)}', space=vmem, size = 0x200, scoped, tag = 'scoped memory for conv_dynamics_fast.1']
  %s0 = inlined_call_operand.vmem [shape: f32[9,256], index: 0, kind: input, shape index: {}]
  %s1 = inlined_call_operand.vmem [shape: f32[2,8,256], index: 1, kind: input, shape index: {}]
  %s2 = inlined_call_operand.vmem [shape: f32[8,72], index: 2, kind: input, shape index: {}]
  %s3 = inlined_call_operand.vmem [shape: f32[8,1], index: 3, kind: input, shape index: {}]
  %s4 = inlined_call_operand.vmem [shape: f32[8,72], index: 4, kind: input, shape index: {}]
  %s5 = inlined_call_operand.vmem [shape: f32[8,1], index: 5, kind: input, shape index: {}]
  %s6 = inlined_call_operand.vmem [shape: f32[72,1], index: 6, kind: input, shape index: {}]
  %s7 = inlined_call_operand.<no memory space> [shape: f32[1,1], index: 7, kind: input, shape index: {}]
  %s8 = inlined_call_operand.vmem [shape: f32[2,1,256], index: 8, kind: output, shape index: {}]
  %s9 = sld [smem:[#allocation0]]
  $region65: #{conv_dynamics_fast.1} parent=0
    _
  %s11 = ssub.s32 1, %s9
  %s12 = scalar_select 0, %s11, %s9
  %v13 = vstv %s7
  %14 = vst [vmem:[#allocation2] sm:$0x1] %v13
  loop: start=0, step=1, limit=4
  $region2: #{conv_dynamics_fast.1} parent=0 // loop_pre_header
    _
  $region3: #{conv_dynamics_fast.1} parent=0 // loop_header
    %s16 = sphi 0, %s20
    %p17 = scmp.ge.s32.totalorder %s16, 4
    %s24 = sphi 0, %s24
    %s26 = sphi 0, %s24
    %s27 = sphi 0, %s26
    %s41 = sphi 0, %s27
    %s47 = sphi 0, %s49
    %s50 = sphi 0, %s47
    %s51 = sphi 0, %s50
    %s67 = sphi 0, %s51
    %s71 = sphi 0, %s71
    %s73 = sphi 0, %s71
    %s74 = sphi 0, %s73
    %s88 = sphi 0, %s74
    %s92 = sphi 0, %s92
    %s94 = sphi 0, %s92
    %s95 = sphi 0, %s94
    %s109 = sphi 0, %s95
    %s113 = sphi 0, %s113
    %s115 = sphi 0, %s113
    %s116 = sphi 0, %s115
    %s130 = sphi 0, %s116
    %s134 = sphi 0, %s134
    %s136 = sphi 0, %s134
    %s137 = sphi 0, %s136
    %s151 = sphi 0, %s137
    %s155 = sphi 0, %s155
    %s157 = sphi 0, %s155
    %s158 = sphi 0, %s157
    %s172 = sphi 0, %s158
    %s176 = sphi 0, %s176
    %s178 = sphi 0, %s176
    %s179 = sphi 0, %s178
    %s193 = sphi 0, %s179
    %s199 = sphi 0, %s201
    %s202 = sphi 0, %s199
    %s203 = sphi 0, %s202
    %s219 = sphi 0, %s203
  $region4: #{conv_dynamics_fast.1} parent=0 // loop_header_branch
    %19 = sbr.rel (%p17) target = $region8
  $region5: #{conv_dynamics_fast.1} parent=0 // loop_body
    %s21 = ssub.s32 %s16, 1
    %s22 = ssub.s32 %s16, 2
    %s23 = sadd.s32 %s16, 1
    %s25 = sadd.s32 %s24, 1
    %p28 = scmp.eq.s32.totalorder %s16, 1
    %p29 = scmp.ne.s32.totalorder %s24, %s26
    %p30 = scmp.eq.s32.totalorder %s16, 0
    %p31 = por %p29, %p30
    %p32 = scmp.ne.s32.totalorder %s24, %s26
    %p33 = scmp.eq.s32.totalorder %s21, 1
    %p34 = por %p32, %p33
    %p35 = scmp.ne.s32.totalorder %s26, %s27
    %p36 = scmp.eq.s32.totalorder %s21, 0
    %p37 = por %p35, %p36
    %p38 = scmp.ne.s32.totalorder %s26, %s27
    %p39 = scmp.eq.s32.totalorder %s22, 1
    %p40 = por %p38, %p39
    %p42 = scmp.ne.s32.totalorder %s27, %s41
    %p43 = scmp.eq.s32.totalorder %s22, 0
    %p44 = por %p42, %p43
    %s45 = ssub.s32 %s16, %s23
    %p46 = scmp.eq.s32.totalorder %s45, 0
    %s48 = sadd.s32 %s47, 1
    %s49 = scalar_select %p46, %s47, %s48
    %p52 = pneg %p46
    %p53 = scmp.eq.s32.totalorder %s16, 1
    %p54 = por %p52, %p53
    %p55 = scmp.ne.s32.totalorder %s47, %s50
    %p56 = scmp.eq.s32.totalorder %s16, 0
    %p57 = por %p55, %p56
    %p58 = scmp.ne.s32.totalorder %s47, %s50
    %p59 = scmp.eq.s32.totalorder %s21, 1
    %p60 = por %p58, %p59
    %p61 = scmp.ne.s32.totalorder %s50, %s51
    %p62 = scmp.eq.s32.totalorder %s21, 0
    %p63 = por %p61, %p62
    %p64 = scmp.ne.s32.totalorder %s50, %s51
    %p65 = scmp.eq.s32.totalorder %s22, 1
    %p66 = por %p64, %p65
    %p68 = scmp.ne.s32.totalorder %s51, %s67
    %p69 = scmp.eq.s32.totalorder %s22, 0
    %p70 = por %p68, %p69
    %s72 = sadd.s32 %s71, 1
    %p75 = scmp.eq.s32.totalorder %s16, 1
    %p76 = scmp.ne.s32.totalorder %s71, %s73
    %p77 = scmp.eq.s32.totalorder %s16, 0
    %p78 = por %p76, %p77
    %p79 = scmp.ne.s32.totalorder %s71, %s73
    %p80 = scmp.eq.s32.totalorder %s21, 1
    %p81 = por %p79, %p80
    %p82 = scmp.ne.s32.totalorder %s73, %s74
    %p83 = scmp.eq.s32.totalorder %s21, 0
    %p84 = por %p82, %p83
    %p85 = scmp.ne.s32.totalorder %s73, %s74
    %p86 = scmp.eq.s32.totalorder %s22, 1
    %p87 = por %p85, %p86
    %p89 = scmp.ne.s32.totalorder %s74, %s88
    %p90 = scmp.eq.s32.totalorder %s22, 0
    %p91 = por %p89, %p90
    %s93 = sadd.s32 %s92, 1
    %p96 = scmp.eq.s32.totalorder %s16, 1
    %p97 = scmp.ne.s32.totalorder %s92, %s94
    %p98 = scmp.eq.s32.totalorder %s16, 0
    %p99 = por %p97, %p98
    %p100 = scmp.ne.s32.totalorder %s92, %s94
    %p101 = scmp.eq.s32.totalorder %s21, 1
    %p102 = por %p100, %p101
    %p103 = scmp.ne.s32.totalorder %s94, %s95
    %p104 = scmp.eq.s32.totalorder %s21, 0
    %p105 = por %p103, %p104
    %p106 = scmp.ne.s32.totalorder %s94, %s95
    %p107 = scmp.eq.s32.totalorder %s22, 1
    %p108 = por %p106, %p107
    %p110 = scmp.ne.s32.totalorder %s95, %s109
    %p111 = scmp.eq.s32.totalorder %s22, 0
    %p112 = por %p110, %p111
    %s114 = sadd.s32 %s113, 1
    %p117 = scmp.eq.s32.totalorder %s16, 1
    %p118 = scmp.ne.s32.totalorder %s113, %s115
    %p119 = scmp.eq.s32.totalorder %s16, 0
    %p120 = por %p118, %p119
    %p121 = scmp.ne.s32.totalorder %s113, %s115
    %p122 = scmp.eq.s32.totalorder %s21, 1
    %p123 = por %p121, %p122
    %p124 = scmp.ne.s32.totalorder %s115, %s116
    %p125 = scmp.eq.s32.totalorder %s21, 0
    %p126 = por %p124, %p125
    %p127 = scmp.ne.s32.totalorder %s115, %s116
    %p128 = scmp.eq.s32.totalorder %s22, 1
    %p129 = por %p127, %p128
    %p131 = scmp.ne.s32.totalorder %s116, %s130
    %p132 = scmp.eq.s32.totalorder %s22, 0
    %p133 = por %p131, %p132
    %s135 = sadd.s32 %s134, 1
    %p138 = scmp.eq.s32.totalorder %s16, 1
    %p139 = scmp.ne.s32.totalorder %s134, %s136
    %p140 = scmp.eq.s32.totalorder %s16, 0
    %p141 = por %p139, %p140
    %p142 = scmp.ne.s32.totalorder %s134, %s136
    %p143 = scmp.eq.s32.totalorder %s21, 1
    %p144 = por %p142, %p143
    %p145 = scmp.ne.s32.totalorder %s136, %s137
    %p146 = scmp.eq.s32.totalorder %s21, 0
    %p147 = por %p145, %p146
    %p148 = scmp.ne.s32.totalorder %s136, %s137
    %p149 = scmp.eq.s32.totalorder %s22, 1
    %p150 = por %p148, %p149
    %p152 = scmp.ne.s32.totalorder %s137, %s151
    %p153 = scmp.eq.s32.totalorder %s22, 0
    %p154 = por %p152, %p153
    %s156 = sadd.s32 %s155, 1
    %p159 = scmp.eq.s32.totalorder %s16, 1
    %p160 = scmp.ne.s32.totalorder %s155, %s157
    %p161 = scmp.eq.s32.totalorder %s16, 0
    %p162 = por %p160, %p161
    %p163 = scmp.ne.s32.totalorder %s155, %s157
    %p164 = scmp.eq.s32.totalorder %s21, 1
    %p165 = por %p163, %p164
    %p166 = scmp.ne.s32.totalorder %s157, %s158
    %p167 = scmp.eq.s32.totalorder %s21, 0
    %p168 = por %p166, %p167
    %p169 = scmp.ne.s32.totalorder %s157, %s158
    %p170 = scmp.eq.s32.totalorder %s22, 1
    %p171 = por %p169, %p170
    %p173 = scmp.ne.s32.totalorder %s158, %s172
    %p174 = scmp.eq.s32.totalorder %s22, 0
    %p175 = por %p173, %p174
    %s177 = sadd.s32 %s176, 1
    %p180 = scmp.eq.s32.totalorder %s16, 1
    %p181 = scmp.ne.s32.totalorder %s176, %s178
    %p182 = scmp.eq.s32.totalorder %s16, 0
    %p183 = por %p181, %p182
    %p184 = scmp.ne.s32.totalorder %s176, %s178
    %p185 = scmp.eq.s32.totalorder %s21, 1
    %p186 = por %p184, %p185
    %p187 = scmp.ne.s32.totalorder %s178, %s179
    %p188 = scmp.eq.s32.totalorder %s21, 0
    %p189 = por %p187, %p188
    %p190 = scmp.ne.s32.totalorder %s178, %s179
    %p191 = scmp.eq.s32.totalorder %s22, 1
    %p192 = por %p190, %p191
    %p194 = scmp.ne.s32.totalorder %s179, %s193
    %p195 = scmp.eq.s32.totalorder %s22, 0
    %p196 = por %p194, %p195
    %s197 = ssub.s32 %s16, %s23
    %p198 = scmp.eq.s32.totalorder %s197, 0
    %s200 = sadd.s32 %s199, 1
    %s201 = scalar_select %p198, %s199, %s200
    %p204 = pneg %p198
    %p205 = scmp.eq.s32.totalorder %s16, 1
    %p206 = por %p204, %p205
    %p207 = scmp.ne.s32.totalorder %s199, %s202
    %p208 = scmp.eq.s32.totalorder %s16, 0
    %p209 = por %p207, %p208
    %p210 = scmp.ne.s32.totalorder %s199, %s202
    %p211 = scmp.eq.s32.totalorder %s21, 1
    %p212 = por %p210, %p211
    %p213 = scmp.ne.s32.totalorder %s202, %s203
    %p214 = scmp.eq.s32.totalorder %s21, 0
    %p215 = por %p213, %p214
    %p216 = scmp.ne.s32.totalorder %s202, %s203
    %p217 = scmp.eq.s32.totalorder %s22, 1
    %p218 = por %p216, %p217
    %p220 = scmp.ne.s32.totalorder %s203, %s219
    %p221 = scmp.eq.s32.totalorder %s22, 0
    %p222 = por %p220, %p221
    %p223 = scmp.le.s32.totalorder 1, %s16
    %p224 = scmp.lt.s32.totalorder %s16, 3
    %p225 = pnand %p223, %p224
    %p226 = pneg %p225
    // Predicated region
    $region9: #{conv_dynamics_fast.1} parent=5 // pred_check
      _
    $region10: #{conv_dynamics_fast.1} parent=5 // pred_check_branch
      %228 = sbr.rel (%p225) target = $region12
    $region11: #{conv_dynamics_fast.1} parent=5 // pred_region
      %s229 = ssub.s32 %s16, 1
      // Predicated region
      $region13: #{conv_dynamics_fast.1} parent=11 // pred_check
        %p230 = pneg %p37
      $region14: #{conv_dynamics_fast.1} parent=11 // pred_check_branch
        %232 = sbr.rel (%p230) target = $region16
      $region15: #{conv_dynamics_fast.1} parent=11 // pred_region
        _
      $region16: #{conv_dynamics_fast.1} parent=11 // pred_fallthru
        _
      // Predicated region
      $region17: #{conv_dynamics_fast.1} parent=11 // pred_check
        %p233 = pneg %p84
      $region18: #{conv_dynamics_fast.1} parent=11 // pred_check_branch
        %235 = sbr.rel (%p233) target = $region20
      $region19: #{conv_dynamics_fast.1} parent=11 // pred_region
        _
      $region20: #{conv_dynamics_fast.1} parent=11 // pred_fallthru
        _
      // Predicated region
      $region21: #{conv_dynamics_fast.1} parent=11 // pred_check
        %p236 = pneg %p105
      $region22: #{conv_dynamics_fast.1} parent=11 // pred_check_branch
        %238 = sbr.rel (%p236) target = $region24
      $region23: #{conv_dynamics_fast.1} parent=11 // pred_region
        _
      $region24: #{conv_dynamics_fast.1} parent=11 // pred_fallthru
        _
      // Predicated region
      $region25: #{conv_dynamics_fast.1} parent=11 // pred_check
        %p239 = pneg %p126
      $region26: #{conv_dynamics_fast.1} parent=11 // pred_check_branch
        %241 = sbr.rel (%p239) target = $region28
      $region27: #{conv_dynamics_fast.1} parent=11 // pred_region
        _
      $region28: #{conv_dynamics_fast.1} parent=11 // pred_fallthru
        _
      // Predicated region
      $region29: #{conv_dynamics_fast.1} parent=11 // pred_check
        %p242 = pneg %p147
      $region30: #{conv_dynamics_fast.1} parent=11 // pred_check_branch
        %244 = sbr.rel (%p242) target = $region32
      $region31: #{conv_dynamics_fast.1} parent=11 // pred_region
        _
      $region32: #{conv_dynamics_fast.1} parent=11 // pred_fallthru
        _
      // Predicated region
      $region33: #{conv_dynamics_fast.1} parent=11 // pred_check
        %p245 = pneg %p168
      $region34: #{conv_dynamics_fast.1} parent=11 // pred_check_branch
        %247 = sbr.rel (%p245) target = $region36
      $region35: #{conv_dynamics_fast.1} parent=11 // pred_region
        _
      $region36: #{conv_dynamics_fast.1} parent=11 // pred_fallthru
        _
      // Predicated region
      $region37: #{conv_dynamics_fast.1} parent=11 // pred_check
        %p248 = pneg %p189
      $region38: #{conv_dynamics_fast.1} parent=11 // pred_check_branch
        %250 = sbr.rel (%p248) target = $region40
      $region39: #{conv_dynamics_fast.1} parent=11 // pred_region
        _
      $region40: #{conv_dynamics_fast.1} parent=11 // pred_fallthru
        _
    $region12: #{conv_dynamics_fast.1} parent=5 // pred_fallthru
      _
    %p251 = scmp.lt.s32.totalorder %s16, 2
    // Predicated region
    $region41: #{conv_dynamics_fast.1} parent=5 // pred_check
      %p252 = pneg %p251
    $region42: #{conv_dynamics_fast.1} parent=5 // pred_check_branch
      %254 = sbr.rel (%p252) target = $region44
    $region43: #{conv_dynamics_fast.1} parent=5 // pred_region
      // Predicated region
      $region45: #{conv_dynamics_fast.1} parent=43 // pred_check
        %p255 = pneg %p57
      $region46: #{conv_dynamics_fast.1} parent=43 // pred_check_branch
        %257 = sbr.rel (%p255) target = $region48
      $region47: #{conv_dynamics_fast.1} parent=43 // pred_region
        %p258 = scmp.lt.s32.totalorder %s16, 1
        %s259 = scalar_select %p258, %s16, 1
        %s260 = smul.addr %s259, 2
        %s261 = smul.addr %s260, 8
        %s262 = scalar_lea.vmem %s1, %s261
      $region48: #{conv_dynamics_fast.1} parent=43 // pred_fallthru
        _
    $region44: #{conv_dynamics_fast.1} parent=5 // pred_fallthru
      _
    %p263 = scmp.le.s32.totalorder 1, %s16
    %p264 = scmp.lt.s32.totalorder %s16, 3
    %p265 = pnand %p263, %p264
    %p266 = pneg %p265
    // Predicated region
    $region49: #{conv_dynamics_fast.1} parent=5 // pred_check
      _
    $region50: #{conv_dynamics_fast.1} parent=5 // pred_check_branch
      %268 = sbr.rel (%p265) target = $region52
    $region51: #{conv_dynamics_fast.1} parent=5 // pred_region
      %s269 = ssub.s32 %s16, 1
      %p270 = pneg %p37
      %p271 = pneg %p34
      %p272 = scmp.lt.s32.totalorder %s21, 1
      %s273 = scalar_select %p272, %s21, 1
      %s274 = smul.addr %s273, 2
      %s275 = smul.addr %s274, 8
      %s276 = scalar_lea.vmem %s1, %s275
      %p277 = pneg %p63
      %p278 = pneg %p60
      %p279 = pneg %p84
      %p280 = pneg %p81
      %p281 = pneg %p105
      %p282 = pneg %p102
      %p283 = pneg %p126
      %p284 = pneg %p123
      %p285 = pneg %p147
      %p286 = pneg %p144
      %p287 = pneg %p168
      %p288 = pneg %p165
      %p289 = pneg %p189
      %p290 = pneg %p186
      %p291 = pneg %p215
      %p292 = pneg %p212
      %p293 = scmp.lt.s32.totalorder %s21, 1
      %s294 = scalar_select %p293, %s21, 1
      %s295 = smul.addr %s294, 2
      %s296 = scalar_lea.vmem %s8, %s295
      %p297 = scmp.lt.s32.totalorder %s21, 1
      %s298 = scalar_select %p297, %s21, 1
      %s299 = smul.addr %s298, 2
      %s300 = smul.addr %s299, 8
      %s301 = scalar_lea.vmem %s1, %s300
      %p302 = scmp.lt.s32.totalorder %s21, 1
      %s303 = scalar_select %p302, %s21, 1
      %s304 = smul.addr %s303, 2
      %s305 = scalar_lea.vmem %s8, %s304
      %v306 = vld [vmem:[%s0] ss:$8 sm:$0x3]
      %s307 = scalar_lea.vmem %s0, 1
      %v308 = vld [vmem:[%s307] ss:$8 sm:$0x3]
      %s309 = scalar_lea.vmem %s0, 2
      %v310 = vld [vmem:[%s309] ss:$8 sm:$0x3]
      %s311 = scalar_lea.vmem %s0, 3
      %v312 = vld [vmem:[%s311] ss:$8 sm:$0x3]
      %s313 = scalar_lea.vmem %s0, 5
      %v314 = vld [vmem:[%s313] ss:$8 sm:$0x3]
      %s315 = scalar_lea.vmem %s0, 6
      %v316 = vld [vmem:[%s315] ss:$8 sm:$0x3]
      %s317 = scalar_lea.vmem %s0, 7
      %v318 = vld [vmem:[%s317] ss:$8 sm:$0x3]
      %s319 = scalar_lea.vmem %s0, 16
      %v320 = vld [vmem:[%s319] ss:$8 sm:$0x3]
      %v321 = vld [vmem:[%s2] sm:$0xff]
      %v322 = vld [vmem:[%s3] sm:$0xff]
      %v323 = vld [vmem:[%s4] sm:$0xff]
      %v324 = vld [vmem:[%s5] sm:$0xff]
      %v325 = vld [vmem:[%s6] sm:$0xff]
      %v326 = vld [vmem:[%s6 + $0x8] sm:$0xff]
      %v327 = vld [vmem:[%s6 + $0x10] sm:$0xff]
      %v328 = vld [vmem:[%s6 + $0x18] sm:$0xff]
      %v329 = vld [vmem:[%s6 + $0x20] sm:$0xff]
      %v330 = vld [vmem:[%s6 + $0x28] sm:$0xff]
      %v331 = vld [vmem:[%s6 + $0x30] sm:$0xff]
      %v332 = vld [vmem:[%s6 + $0x38] sm:$0xff]
      %v333 = vld [vmem:[%s6 + $0x40] sm:$0xff]
      %v334 = vld [vmem:[#allocation2] sm:$0x1]
      %v335 = vld [vmem:[%s301] sm:$0xff]
      %v336 = vld [vmem:[%s301 + $0x8] sm:$0xff]
      %337 = vrot.lane.b32.xlu0 %v335, 17
      %v338 = vpop.permute.xlu0 %337
      %339 = vrot.lane.b32.xlu0 %v336, 17
      %v340 = vpop.permute.xlu0 %339
      %v341 = vlaneseq
      %v342 = vand.u32 %v341, 127
      %vm343 = vcmp.lt.s32.totalorder %v342, 17
      %v344 = vsel %vm343, %v338, %v340
      %v345 = vsel %vm343, %v340, %v338
      %v347 = vlaneseq
      %v348 = vshrl.u32 %v347, 7
      %v349 = vsub.s32 0, %v348
      %v350 = vrot.slane %v306, %v349
      %v351 = vlaneseq
      %v352 = vshrl.u32 %v351, 7
      %v353 = vsub.s32 1, %v352
      %v354 = vrot.slane %v306, %v353
      %v357 = vmul.f32 %v345, %v350
      %v358 = vmul.f32 %v344, %v354
      %359 = vrot.lane.b32.xlu0 %v335, 16
      %v360 = vpop.permute.xlu0 %359
      %361 = vrot.lane.b32.xlu0 %v336, 16
      %v362 = vpop.permute.xlu0 %361
      %vm363 = vcmp.lt.s32.totalorder %v342, 16
      %v364 = vsel %vm363, %v360, %v362
      %v365 = vsel %vm363, %v362, %v360
      %v367 = vlaneseq
      %v368 = vshrl.u32 %v367, 7
      %v369 = vsub.s32 0, %v368
      %v370 = vrot.slane %v308, %v369
      %v371 = vlaneseq
      %v372 = vshrl.u32 %v371, 7
      %v373 = vsub.s32 1, %v372
      %v374 = vrot.slane %v308, %v373
      %v377 = vmul.f32 %v365, %v370
      %v378 = vmul.f32 %v364, %v374
      %379 = vrot.lane.b32.xlu0 %v335, 15
      %v380 = vpop.permute.xlu0 %379
      %381 = vrot.lane.b32.xlu0 %v336, 15
      %v382 = vpop.permute.xlu0 %381
      %vm383 = vcmp.lt.s32.totalorder %v342, 15
      %v384 = vsel %vm383, %v380, %v382
      %v385 = vsel %vm383, %v382, %v380
      %v387 = vlaneseq
      %v388 = vshrl.u32 %v387, 7
      %v389 = vsub.s32 0, %v388
      %v390 = vrot.slane %v310, %v389
      %v391 = vlaneseq
      %v392 = vshrl.u32 %v391, 7
      %v393 = vsub.s32 1, %v392
      %v394 = vrot.slane %v310, %v393
      %v397 = vmul.f32 %v385, %v390
      %v398 = vmul.f32 %v384, %v394
      %399 = vrot.lane.b32.xlu0 %v335, 1
      %v400 = vpop.permute.xlu0 %399
      %401 = vrot.lane.b32.xlu0 %v336, 1
      %v402 = vpop.permute.xlu0 %401
      %vm403 = vcmp.lt.s32.totalorder %v342, 1
      %v404 = vsel %vm403, %v400, %v402
      %v405 = vsel %vm403, %v402, %v400
      %v407 = vlaneseq
      %v408 = vshrl.u32 %v407, 7
      %v409 = vsub.s32 0, %v408
      %v410 = vrot.slane %v312, %v409
      %v411 = vlaneseq
      %v412 = vshrl.u32 %v411, 7
      %v413 = vsub.s32 1, %v412
      %v414 = vrot.slane %v312, %v413
      %v417 = vmul.f32 %v405, %v410
      %v418 = vmul.f32 %v404, %v414
      %419 = vrot.lane.b32.xlu0 %v335, 127
      %v420 = vpop.permute.xlu0 %419
      %421 = vrot.lane.b32.xlu0 %v336, 127
      %v422 = vpop.permute.xlu0 %421
      %vm423 = vcmp.lt.s32.totalorder %v342, 127
      %v424 = vsel %vm423, %v420, %v422
      %v425 = vsel %vm423, %v422, %v420
      %v427 = vlaneseq
      %v428 = vshrl.u32 %v427, 7
      %v429 = vsub.s32 0, %v428
      %v430 = vrot.slane %v314, %v429
      %v431 = vlaneseq
      %v432 = vshrl.u32 %v431, 7
      %v433 = vsub.s32 1, %v432
      %v434 = vrot.slane %v314, %v433
      %v437 = vmul.f32 %v424, %v430
      %v438 = vmul.f32 %v425, %v434
      %439 = vrot.lane.b32.xlu0 %v335, 113
      %v440 = vpop.permute.xlu0 %439
      %441 = vrot.lane.b32.xlu0 %v336, 113
      %v442 = vpop.permute.xlu0 %441
      %vm443 = vcmp.lt.s32.totalorder %v342, 113
      %v444 = vsel %vm443, %v440, %v442
      %v445 = vsel %vm443, %v442, %v440
      %v447 = vlaneseq
      %v448 = vshrl.u32 %v447, 7
      %v449 = vsub.s32 0, %v448
      %v450 = vrot.slane %v316, %v449
      %v451 = vlaneseq
      %v452 = vshrl.u32 %v451, 7
      %v453 = vsub.s32 1, %v452
      %v454 = vrot.slane %v316, %v453
      %v457 = vmul.f32 %v444, %v450
      %v458 = vmul.f32 %v445, %v454
      %459 = vrot.lane.b32.xlu0 %v335, 112
      %v460 = vpop.permute.xlu0 %459
      %461 = vrot.lane.b32.xlu0 %v336, 112
      %v462 = vpop.permute.xlu0 %461
      %vm463 = vcmp.lt.s32.totalorder %v342, 112
      %v464 = vsel %vm463, %v460, %v462
      %v465 = vsel %vm463, %v462, %v460
      %v467 = vlaneseq
      %v468 = vshrl.u32 %v467, 7
      %v469 = vsub.s32 0, %v468
      %v470 = vrot.slane %v318, %v469
      %v471 = vlaneseq
      %v472 = vshrl.u32 %v471, 7
      %v473 = vsub.s32 1, %v472
      %v474 = vrot.slane %v318, %v473
      %v477 = vmul.f32 %v464, %v470
      %v478 = vmul.f32 %v465, %v474
      %479 = vrot.lane.b32.xlu0 %v335, 111
      %v480 = vpop.permute.xlu0 %479
      %481 = vrot.lane.b32.xlu0 %v336, 111
      %v482 = vpop.permute.xlu0 %481
      %vm483 = vcmp.lt.s32.totalorder %v342, 111
      %v484 = vsel %vm483, %v480, %v482
      %v485 = vsel %vm483, %v482, %v480
      %v487 = vlaneseq
      %v488 = vshrl.u32 %v487, 7
      %v489 = vsub.s32 0, %v488
      %v490 = vrot.slane %v320, %v489
      %v491 = vlaneseq
      %v492 = vshrl.u32 %v491, 7
      %v493 = vsub.s32 1, %v492
      %v494 = vrot.slane %v320, %v493
      %v497 = vmul.f32 %v484, %v490
      %v498 = vmul.f32 %v485, %v494
      %500 = vset.pattern.permute.xlu0 0
      %501 = vperm.xlu0 %500, %v322
      %v502 = vpop.permute.xlu0 %501
      %vm504 = vcmask 588800
      %v506 = vsel %vm504, %v321, 0
      %508 = vmatprep.subr.mxu0 %v358
      %509 = vmatpush1.msra.mxu0 %v357
      %510 = vmatprep.subr.mxu0 %v378
      %511 = vmatpush1.msra.mxu0 %v377
      %512 = vmatprep.subr.mxu0 %v398
      %513 = vmatpush1.msra.mxu0 %v397
      %514 = vmatprep.subr.mxu0 %v418
      %515 = vmatpush1.msra.mxu0 %v417
      %516 = vmatprep.subr.mxu0 %v336
      %517 = vmatpush1.msra.mxu0 %v335
      %518 = vmatprep.subr.mxu0 %v438
      %519 = vmatpush1.msra.mxu0 %v437
      %520 = vmatprep.subr.mxu0 %v458
      %521 = vmatpush1.msra.mxu0 %v457
      %522 = vmatprep.subr.mxu0 %v478
      %523 = vmatpush1.msra.mxu0 %v477
      %524 = vmatprep.subr.mxu0 %v498
      %525 = vmatpush1.msra.mxu0 %v497
      %526 = vmatprep.subr.mxu0 0.0
      %527 = vmatpush1.msra.mxu0 0.0
      %528 = vmatprep.subr.mxu0 0.0
      %529 = vmatpush1.msra.mxu0 0.0
      %530 = vmatprep.subr.mxu0 0.0
      %531 = vmatpush1.msra.mxu0 0.0
      %532 = vmatprep.subr.mxu0 0.0
      %533 = vmatpush1.msra.mxu0 0.0
      %534 = vmatprep.subr.mxu0 0.0
      %535 = vmatpush1.msra.mxu0 0.0
      %536 = vmatprep.subr.mxu0 0.0
      %537 = vmatpush1.msra.mxu0 0.0
      %538 = vmatprep.subr.mxu0 0.0
      %539 = vmatpush1.msra.mxu0 0.0
      %540 = vmatprep.subr.mxu0 0.0
      %541 = vmatpush1.msra.mxu0 0.0
      %542 = vmatprep.subr.mxu0 0.0
      %543 = vmatpush1.msra.mxu0 0.0
      %544 = vmatprep.subr.mxu0 0.0
      %545 = vmatpush1.msra.mxu0 0.0
      %546 = vmatprep.subr.mxu0 0.0
      %547 = vmatpush1.msra.mxu0 0.0
      %548 = vmatprep.subr.mxu0 0.0
      %549 = vmatpush1.msra.mxu0 0.0
      %550 = vmatprep.subr.mxu0 0.0
      %551 = vmatpush1.msra.mxu0 0.0
      %552 = vmatprep.subr.mxu0 0.0
      %553 = vmatpush1.msra.mxu0 0.0
      %554 = vmatprep.subr.mxu0 0.0
      %555 = vmatpush1.msra.mxu0 0.0
      %556 = vmatprep.subr.mxu0 0.0
      %557 = vmatpush1.msra.mxu0 0.0
      %558 = vmatprep.subr.mxu0 0.0
      %559 = vmatpush1.msra.mxu0 0.0
      %560 = vmatprep.subr.mxu0 0.0
      %561 = vmatpush1.msra.mxu0 0.0
      %562 = vmatprep.subr.mxu0 0.0
      %563 = vmatpush1.msra.mxu0 0.0
      %564 = vmatprep.subr.mxu0 0.0
      %565 = vmatpush1.msra.mxu0 0.0
      %566 = vmatprep.subr.mxu0 0.0
      %567 = vmatpush1.msra.mxu0 0.0
      %568 = vmatprep.subr.mxu0 0.0
      %569 = vmatpush1.msra.mxu0 0.0
      %570 = vmatprep.subr.mxu0 0.0
      %571 = vmatpush1.msra.mxu0 0.0
      %572 = vmatprep.mubr.f32.mxu0 0.0
      %573 = vmatmul.mubr.f32.gmra.mrb[0].mxu0 %v506
      %v574 = vpop.f32.mrb[0].mxu0
      %v575 = vadd.f32 %v502, %v574
      %v576 = vpop.f32.mrb[0].mxu0
      %v577 = vadd.f32 %v502, %v576
      %578 = vdwg.mxu0
      %vm579 = vcmp.gt.f32.partialorder %v575, 0.0
      %vm580 = vcmp.gt.f32.partialorder %v577, 0.0
      %v581 = vmul.f32 %v575, 0.01
      %v582 = vmul.f32 %v577, 0.01
      %v583 = vsel %vm579, %v575, %v581
      %v584 = vsel %vm580, %v577, %v582
      %585 = vrot.lane.b32.xlu0 %v583, 17
      %v586 = vpop.permute.xlu0 %585
      %587 = vrot.lane.b32.xlu0 %v584, 17
      %v588 = vpop.permute.xlu0 %587
      %v589 = vsel %vm343, %v586, %v588
      %v590 = vsel %vm343, %v588, %v586
      %v591 = vmul.f32 %v590, %v350
      %v592 = vmul.f32 %v589, %v354
      %593 = vrot.lane.b32.xlu0 %v583, 16
      %v594 = vpop.permute.xlu0 %593
      %595 = vrot.lane.b32.xlu0 %v584, 16
      %v596 = vpop.permute.xlu0 %595
      %v597 = vsel %vm363, %v594, %v596
      %v598 = vsel %vm363, %v596, %v594
      %v599 = vmul.f32 %v598, %v370
      %v600 = vmul.f32 %v597, %v374
      %601 = vrot.lane.b32.xlu0 %v583, 15
      %v602 = vpop.permute.xlu0 %601
      %603 = vrot.lane.b32.xlu0 %v584, 15
      %v604 = vpop.permute.xlu0 %603
      %v605 = vsel %vm383, %v602, %v604
      %v606 = vsel %vm383, %v604, %v602
      %v607 = vmul.f32 %v606, %v390
      %v608 = vmul.f32 %v605, %v394
      %609 = vrot.lane.b32.xlu0 %v583, 1
      %v610 = vpop.permute.xlu0 %609
      %611 = vrot.lane.b32.xlu0 %v584, 1
      %v612 = vpop.permute.xlu0 %611
      %v613 = vsel %vm403, %v610, %v612
      %v614 = vsel %vm403, %v612, %v610
      %v615 = vmul.f32 %v614, %v410
      %v616 = vmul.f32 %v613, %v414
      %617 = vrot.lane.b32.xlu0 %v583, 127
      %v618 = vpop.permute.xlu0 %617
      %619 = vrot.lane.b32.xlu0 %v584, 127
      %v620 = vpop.permute.xlu0 %619
      %v621 = vsel %vm423, %v618, %v620
      %v622 = vsel %vm423, %v620, %v618
      %v623 = vmul.f32 %v621, %v430
      %v624 = vmul.f32 %v622, %v434
      %625 = vrot.lane.b32.xlu0 %v583, 113
      %v626 = vpop.permute.xlu0 %625
      %627 = vrot.lane.b32.xlu0 %v584, 113
      %v628 = vpop.permute.xlu0 %627
      %v629 = vsel %vm443, %v626, %v628
      %v630 = vsel %vm443, %v628, %v626
      %v631 = vmul.f32 %v629, %v450
      %v632 = vmul.f32 %v630, %v454
      %633 = vrot.lane.b32.xlu0 %v583, 112
      %v634 = vpop.permute.xlu0 %633
      %635 = vrot.lane.b32.xlu0 %v584, 112
      %v636 = vpop.permute.xlu0 %635
      %v637 = vsel %vm463, %v634, %v636
      %v638 = vsel %vm463, %v636, %v634
      %v639 = vmul.f32 %v637, %v470
      %v640 = vmul.f32 %v638, %v474
      %641 = vrot.lane.b32.xlu0 %v583, 111
      %v642 = vpop.permute.xlu0 %641
      %643 = vrot.lane.b32.xlu0 %v584, 111
      %v644 = vpop.permute.xlu0 %643
      %v645 = vsel %vm483, %v642, %v644
      %v646 = vsel %vm483, %v644, %v642
      %v647 = vmul.f32 %v645, %v490
      %v648 = vmul.f32 %v646, %v494
      %650 = vset.pattern.permute.xlu0 0
      %651 = vperm.xlu0 %650, %v324
      %v652 = vpop.permute.xlu0 %651
      %v655 = vsel %vm504, %v323, 0
      %657 = vmatprep.subr.mxu0 %v592
      %658 = vmatpush1.msra.mxu0 %v591
      %659 = vmatprep.subr.mxu0 %v600
      %660 = vmatpush1.msra.mxu0 %v599
      %661 = vmatprep.subr.mxu0 %v608
      %662 = vmatpush1.msra.mxu0 %v607
      %663 = vmatprep.subr.mxu0 %v616
      %664 = vmatpush1.msra.mxu0 %v615
      %665 = vmatprep.subr.mxu0 %v584
      %666 = vmatpush1.msra.mxu0 %v583
      %667 = vmatprep.subr.mxu0 %v624
      %668 = vmatpush1.msra.mxu0 %v623
      %669 = vmatprep.subr.mxu0 %v632
      %670 = vmatpush1.msra.mxu0 %v631
      %671 = vmatprep.subr.mxu0 %v640
      %672 = vmatpush1.msra.mxu0 %v639
      %673 = vmatprep.subr.mxu0 %v648
      %674 = vmatpush1.msra.mxu0 %v647
      %675 = vmatprep.subr.mxu0 0.0
      %676 = vmatpush1.msra.mxu0 0.0
      %677 = vmatprep.subr.mxu0 0.0
      %678 = vmatpush1.msra.mxu0 0.0
      %679 = vmatprep.subr.mxu0 0.0
      %680 = vmatpush1.msra.mxu0 0.0
      %681 = vmatprep.subr.mxu0 0.0
      %682 = vmatpush1.msra.mxu0 0.0
      %683 = vmatprep.subr.mxu0 0.0
      %684 = vmatpush1.msra.mxu0 0.0
      %685 = vmatprep.subr.mxu0 0.0
      %686 = vmatpush1.msra.mxu0 0.0
      %687 = vmatprep.subr.mxu0 0.0
      %688 = vmatpush1.msra.mxu0 0.0
      %689 = vmatprep.subr.mxu0 0.0
      %690 = vmatpush1.msra.mxu0 0.0
      %691 = vmatprep.subr.mxu0 0.0
      %692 = vmatpush1.msra.mxu0 0.0
      %693 = vmatprep.subr.mxu0 0.0
      %694 = vmatpush1.msra.mxu0 0.0
      %695 = vmatprep.subr.mxu0 0.0
      %696 = vmatpush1.msra.mxu0 0.0
      %697 = vmatprep.subr.mxu0 0.0
      %698 = vmatpush1.msra.mxu0 0.0
      %699 = vmatprep.subr.mxu0 0.0
      %700 = vmatpush1.msra.mxu0 0.0
      %701 = vmatprep.subr.mxu0 0.0
      %702 = vmatpush1.msra.mxu0 0.0
      %703 = vmatprep.subr.mxu0 0.0
      %704 = vmatpush1.msra.mxu0 0.0
      %705 = vmatprep.subr.mxu0 0.0
      %706 = vmatpush1.msra.mxu0 0.0
      %707 = vmatprep.subr.mxu0 0.0
      %708 = vmatpush1.msra.mxu0 0.0
      %709 = vmatprep.subr.mxu0 0.0
      %710 = vmatpush1.msra.mxu0 0.0
      %711 = vmatprep.subr.mxu0 0.0
      %712 = vmatpush1.msra.mxu0 0.0
      %713 = vmatprep.subr.mxu0 0.0
      %714 = vmatpush1.msra.mxu0 0.0
      %715 = vmatprep.subr.mxu0 0.0
      %716 = vmatpush1.msra.mxu0 0.0
      %717 = vmatprep.subr.mxu0 0.0
      %718 = vmatpush1.msra.mxu0 0.0
      %719 = vmatprep.subr.mxu0 0.0
      %720 = vmatpush1.msra.mxu0 0.0
      %721 = vmatprep.mubr.f32.mxu0 0.0
      %722 = vmatmul.mubr.f32.gmra.mrb[0].mxu0 %v655
      %v723 = vpop.f32.mrb[0].mxu0
      %v724 = vadd.f32 %v652, %v723
      %v725 = vpop.f32.mrb[0].mxu0
      %v726 = vadd.f32 %v652, %v725
      %727 = vdwg.mxu0
      %vm728 = vcmp.gt.f32.partialorder %v724, 0.0
      %vm729 = vcmp.gt.f32.partialorder %v726, 0.0
      %v730 = vmul.f32 %v724, 0.01
      %v731 = vmul.f32 %v726, 0.01
      %v732 = vsel %vm728, %v724, %v730
      %v733 = vsel %vm729, %v726, %v731
      %734 = vrot.lane.b32.xlu0 %v732, 17
      %v735 = vpop.permute.xlu0 %734
      %736 = vrot.lane.b32.xlu0 %v733, 17
      %v737 = vpop.permute.xlu0 %736
      %v738 = vsel %vm343, %v735, %v737
      %v739 = vsel %vm343, %v737, %v735
      %v740 = vmul.f32 %v739, %v350
      %v741 = vmul.f32 %v738, %v354
      %742 = vrot.lane.b32.xlu0 %v732, 16
      %v743 = vpop.permute.xlu0 %742
      %744 = vrot.lane.b32.xlu0 %v733, 16
      %v745 = vpop.permute.xlu0 %744
      %v746 = vsel %vm363, %v743, %v745
      %v747 = vsel %vm363, %v745, %v743
      %v748 = vmul.f32 %v747, %v370
      %v749 = vmul.f32 %v746, %v374
      %750 = vrot.lane.b32.xlu0 %v732, 15
      %v751 = vpop.permute.xlu0 %750
      %752 = vrot.lane.b32.xlu0 %v733, 15
      %v753 = vpop.permute.xlu0 %752
      %v754 = vsel %vm383, %v751, %v753
      %v755 = vsel %vm383, %v753, %v751
      %v756 = vmul.f32 %v755, %v390
      %v757 = vmul.f32 %v754, %v394
      %758 = vrot.lane.b32.xlu0 %v732, 1
      %v759 = vpop.permute.xlu0 %758
      %760 = vrot.lane.b32.xlu0 %v733, 1
      %v761 = vpop.permute.xlu0 %760
      %v762 = vsel %vm403, %v759, %v761
      %v763 = vsel %vm403, %v761, %v759
      %v764 = vmul.f32 %v763, %v410
      %v765 = vmul.f32 %v762, %v414
      %766 = vrot.lane.b32.xlu0 %v732, 127
      %v767 = vpop.permute.xlu0 %766
      %768 = vrot.lane.b32.xlu0 %v733, 127
      %v769 = vpop.permute.xlu0 %768
      %v770 = vsel %vm423, %v767, %v769
      %v771 = vsel %vm423, %v769, %v767
      %v772 = vmul.f32 %v770, %v430
      %v773 = vmul.f32 %v771, %v434
      %774 = vrot.lane.b32.xlu0 %v732, 113
      %v775 = vpop.permute.xlu0 %774
      %776 = vrot.lane.b32.xlu0 %v733, 113
      %v777 = vpop.permute.xlu0 %776
      %v778 = vsel %vm443, %v775, %v777
      %v779 = vsel %vm443, %v777, %v775
      %v780 = vmul.f32 %v778, %v450
      %v781 = vmul.f32 %v779, %v454
      %782 = vrot.lane.b32.xlu0 %v732, 112
      %v783 = vpop.permute.xlu0 %782
      %784 = vrot.lane.b32.xlu0 %v733, 112
      %v785 = vpop.permute.xlu0 %784
      %v786 = vsel %vm463, %v783, %v785
      %v787 = vsel %vm463, %v785, %v783
      %v788 = vmul.f32 %v786, %v470
      %v789 = vmul.f32 %v787, %v474
      %790 = vrot.lane.b32.xlu0 %v732, 111
      %v791 = vpop.permute.xlu0 %790
      %792 = vrot.lane.b32.xlu0 %v733, 111
      %v793 = vpop.permute.xlu0 %792
      %v794 = vsel %vm483, %v791, %v793
      %v795 = vsel %vm483, %v793, %v791
      %v796 = vmul.f32 %v794, %v490
      %v797 = vmul.f32 %v795, %v494
      %799 = vset.pattern.permute.xlu0 0
      %800 = vperm.xlu0 %799, %v325
      %v801 = vpop.permute.xlu0 %800
      %804 = vset.pattern.permute.xlu0 0
      %805 = vperm.xlu0 %804, %v326
      %v806 = vpop.permute.xlu0 %805
      %809 = vset.pattern.permute.xlu0 0
      %810 = vperm.xlu0 %809, %v327
      %v811 = vpop.permute.xlu0 %810
      %814 = vset.pattern.permute.xlu0 0
      %815 = vperm.xlu0 %814, %v328
      %v816 = vpop.permute.xlu0 %815
      %819 = vset.pattern.permute.xlu0 0
      %820 = vperm.xlu0 %819, %v329
      %v821 = vpop.permute.xlu0 %820
      %824 = vset.pattern.permute.xlu0 0
      %825 = vperm.xlu0 %824, %v330
      %v826 = vpop.permute.xlu0 %825
      %829 = vset.pattern.permute.xlu0 0
      %830 = vperm.xlu0 %829, %v331
      %v831 = vpop.permute.xlu0 %830
      %834 = vset.pattern.permute.xlu0 0
      %835 = vperm.xlu0 %834, %v332
      %v836 = vpop.permute.xlu0 %835
      %839 = vset.pattern.permute.xlu0 0
      %840 = vperm.xlu0 %839, %v333
      %v841 = vpop.permute.xlu0 %840
      %v843 = vmul.f32 %v740, %v801
      %v844 = vmul.f32 %v741, %v801
      %v845 = vmul.f32 %v748, %v806
      %v846 = vmul.f32 %v749, %v806
      %v847 = vmul.f32 %v756, %v811
      %v848 = vmul.f32 %v757, %v811
      %v849 = vmul.f32 %v764, %v816
      %v850 = vmul.f32 %v765, %v816
      %v851 = vmul.f32 %v732, %v821
      %v852 = vmul.f32 %v733, %v821
      %v853 = vmul.f32 %v772, %v826
      %v854 = vmul.f32 %v773, %v826
      %v855 = vmul.f32 %v780, %v831
      %v856 = vmul.f32 %v781, %v831
      %v857 = vmul.f32 %v788, %v836
      %v858 = vmul.f32 %v789, %v836
      %v859 = vmul.f32 %v796, %v841
      %v860 = vmul.f32 %v797, %v841
      %v861 = vadd.f32 %v843, %v845
      %v862 = vadd.f32 %v861, %v847
      %v863 = vadd.f32 %v862, %v849
      %v864 = vadd.f32 %v863, %v851
      %v865 = vadd.f32 %v864, %v853
      %v866 = vadd.f32 %v865, %v855
      %v867 = vadd.f32 %v866, %v857
      %v868 = vadd.f32 %v867, %v859
      %v869 = vrot.slane %v868, 4
      %v870 = vadd.f32 %v868, %v869
      %v871 = vrot.slane %v870, 2
      %v872 = vadd.f32 %v870, %v871
      %v873 = vrot.slane %v872, 1
      %v874 = vadd.f32 %v872, %v873
      %v875 = vadd.f32 %v844, %v846
      %v876 = vadd.f32 %v875, %v848
      %v877 = vadd.f32 %v876, %v850
      %v878 = vadd.f32 %v877, %v852
      %v879 = vadd.f32 %v878, %v854
      %v880 = vadd.f32 %v879, %v856
      %v881 = vadd.f32 %v880, %v858
      %v882 = vadd.f32 %v881, %v860
      %v883 = vrot.slane %v882, 4
      %v884 = vadd.f32 %v882, %v883
      %v885 = vrot.slane %v884, 2
      %v886 = vadd.f32 %v884, %v885
      %v887 = vrot.slane %v886, 1
      %v888 = vadd.f32 %v886, %v887
      %890 = vset.pattern.permute.xlu0 0
      %891 = vperm.xlu0 %890, %v334
      %v892 = vpop.permute.xlu0 %891
      %v894 = vlaneseq
      %v895 = vshrl.u32 %v894, 7
      %v896 = vsub.s32 0, %v895
      %v897 = vrot.slane %v892, %v896
      %v898 = vadd.f32 %v874, %v897
      %v899 = vadd.f32 %v888, %v897
      %v902 = vcombine.low %v898, %v899
      %v904 = vunpack.c.l.s4 1966171168
      %v905 = vunpack.c.0.s8 %v904
      %v906 = vlaneseq
      %v907 = vshrl.u32 %v906, 7
      %v908 = vsub.s32 %v905, %v907
      %v909 = vrot.slane %v902, %v908
      %v911 = vunpack.c.l.s4 1966171168
      %v912 = vunpack.c.0.s8 %v911
      %v913 = vlaneseq
      %v914 = vshrl.u32 %v913, 7
      %v915 = vsub.s32 %v912, %v914
      %v916 = vrot.slane %v909, %v915
      %v918 = vlaneseq
      %vm919 = vcmp.ge.s32.totalorder %v918, 0
      %vm920 = vcmp.lt.s32.totalorder %v918, 256
      %vm921 = vmand %vm919, %vm920
      %922 = vst.msk [vmem:[%s305] sm:$0x3] %vm921, %v916
      %p923 = scmp.lt.s32.totalorder %s21, 1
      %s924 = scalar_select %p923, %s21, 1
      %s925 = smul.addr %s924, 2
      %s926 = scalar_lea.vmem %s8, %s925
      // Predicated region
      $region53: #{conv_dynamics_fast.1} parent=51 // pred_check
        %p927 = pneg %p212
      $region54: #{conv_dynamics_fast.1} parent=51 // pred_check_branch
        %929 = sbr.rel (%p927) target = $region56
      $region55: #{conv_dynamics_fast.1} parent=51 // pred_region
        _
      $region56: #{conv_dynamics_fast.1} parent=51 // pred_fallthru
        _
    $region52: #{conv_dynamics_fast.1} parent=5 // pred_fallthru
      _
    %p930 = scmp.le.s32.totalorder 2, %s16
    // Predicated region
    $region57: #{conv_dynamics_fast.1} parent=5 // pred_check
      %p931 = pneg %p930
    $region58: #{conv_dynamics_fast.1} parent=5 // pred_check_branch
      %933 = sbr.rel (%p931) target = $region60
    $region59: #{conv_dynamics_fast.1} parent=5 // pred_region
      %s934 = ssub.s32 %s16, 2
      // Predicated region
      $region61: #{conv_dynamics_fast.1} parent=59 // pred_check
        %p935 = pneg %p218
      $region62: #{conv_dynamics_fast.1} parent=59 // pred_check_branch
        %937 = sbr.rel (%p935) target = $region64
      $region63: #{conv_dynamics_fast.1} parent=59 // pred_region
        %p938 = scmp.lt.s32.totalorder %s22, 1
        %s939 = scalar_select %p938, %s22, 1
        %s940 = smul.addr %s939, 2
        %s941 = scalar_lea.vmem %s8, %s940
      $region64: #{conv_dynamics_fast.1} parent=59 // pred_fallthru
        _
    $region60: #{conv_dynamics_fast.1} parent=5 // pred_fallthru
      _
  $region6: #{conv_dynamics_fast.1} parent=0 // loop_footer
    %s20 = sadd.s32 1, %s16
  $region7: #{conv_dynamics_fast.1} parent=0 // loop_footer_branch
    %15 = sbr.rel target = $region3
  $region8: #{conv_dynamics_fast.1} parent=0 // loop_exit
    _

</llo_original>
